<compile_context>
chip_gen: v5e
topology: v5e:2x2
jax: 0.10.0
libtpu: 0.0.40
codegen_flags: <defaults>
</compile_context>

<pallas_src>
import jax
import jax.numpy as jnp
from jax.experimental import pallas as pl
from jax.experimental.pallas import tpu as pltpu


def _round_up(x, m):
    return (x + m - 1) // m * m


def _embed_kernel(a_ref, x_ref, w_ref, b_ref, o_ref, acc_ref):
    """Computes one (TM, TE) output tile; K is reduced over grid axis 2.

    a_ref:   (1, 1)   f32 SMEM  -- PReLU shared slope
    x_ref:   (TM, TK) bf16      -- patch tile
    w_ref:   (TK, TE) bf16      -- weight tile
    b_ref:   (1, TE)  f32       -- bias tile
    o_ref:   (TM, TE) f32       -- output tile
    acc_ref: (TM, TE) f32       -- VMEM accumulator, resident across K steps
    """
    k = pl.program_id(2)

    @pl.when(k == 0)
    def _():
        acc_ref[...] = jnp.zeros_like(acc_ref)

    acc_ref[...] += jnp.dot(x_ref[...], w_ref[...],
                            preferred_element_type=jnp.float32)

    # Epilogue (bias + PReLU + store) only on the last K step: scalar read and
    # bias broadcast stay out of the reduction loop.
    @pl.when(k == pl.num_programs(2) - 1)
    def _():
        a = a_ref[0, 0]
        y = acc_ref[...] + b_ref[...]
        o_ref[...] = jnp.where(y > 0, y, a * y)


def vit_embedder_pallas(x, weight, bias, prelu_a, patch_size):
    """
    x:       (N, C, D, H, W)  float32   (NCDHW, PyTorch Conv3d convention)
    weight:  (E, C, p, p, p)  float32   (PyTorch Conv3d weight layout)
    bias:    (E,)             float32
    prelu_a: scalar           float32   (nn.PReLU single shared parameter)
    returns: (N, E, Dp, Hp, Wp) float32
    """
    N, C, D, H, W = x.shape
    E = weight.shape[0]
    p = patch_size
    Dp, Hp, Wp = D // p, H // p, W // p
    K = C * p * p * p
    M = N * Dp * Hp * Wp

    # --- glue: patchify (exact Conv3d with kernel=stride=p, padding=0) ---
    # Relies on XLA fusing this transpose/reshape into the pallas_call input
    # copy.  TODO(synk): move the patch gather into the kernel
    # (memory_space=pl.ANY + manual strided DMA) to guarantee no extra HBM
    # round trip of the (M, K) patch tensor.
    xp = x.reshape(N, C, Dp, p, Hp, p, Wp, p)
    xp = jnp.transpose(xp, (0, 2, 4, 6, 1, 3, 5, 7))     # (N,Dp,Hp,Wp,C,p,p,p)
    patches = xp.reshape(M, K)

    # Conv3d weight (E, C, p, p, p) -> (K, E); reduction order matches patches.
    w_mat = weight.reshape(E, K).T

    # --- tile sizes: lane/MXU aligned, sized for a 64 MiB (v7x) VMEM budget ---
    TM = min(512, _round_up(M, 8))
    M_pad = _round_up(M, TM)

    E_pad = _round_up(E, 128)
    if E_pad % 512 == 0:
        TE = 512
    elif E_pad % 256 == 0:
        TE = 256
    else:
        TE = 128

    K_pad = _round_up(K, 128)
    if K_pad <= 2048:
        TK = K_pad                 # small K: no reduction tiling needed
    else:
        TK = 128
        for cand in (2048, 1024, 512, 256):
            if K_pad % cand == 0:
                TK = cand
                break

    # --- pad to aligned shapes; cast matmul operands to bf16 (MXU native) ---
    patches = jnp.pad(patches, ((0, M_pad - M), (0, K_pad - K))).astype(jnp.bfloat16)
    w_mat = jnp.pad(w_mat, ((0, K_pad - K), (0, E_pad - E))).astype(jnp.bfloat16)
    b_mat = jnp.pad(bias.astype(jnp.float32), (0, E_pad - E)).reshape(1, E_pad)
    a_mat = jnp.asarray(prelu_a, jnp.float32).reshape(1, 1)

    grid = (M_pad // TM, E_pad // TE, K_pad // TK)

    # Double-buffered inputs/output + f32 accumulator; leave headroom on v7x.
    vmem_need = 2 * (TM * TK * 2 + TK * TE * 2 + TE * 4 + TM * TE * 4) + TM * TE * 4
    vmem_limit = int(min(max(2 * vmem_need, 16 << 20), 48 << 20))

    out = pl.pallas_call(
        _embed_kernel,
        out_shape=jax.ShapeDtypeStruct((M_pad, E_pad), jnp.float32),
        grid_spec=pltpu.PrefetchScalarGridSpec(
            num_scalar_prefetch=0,
            grid=grid,
            in_specs=[
                pl.BlockSpec(memory_space=pltpu.MemorySpace.SMEM),    # PReLU slope
                pl.BlockSpec((TM, TK), lambda i, j, k: (i, k)),       # patches
                pl.BlockSpec((TK, TE), lambda i, j, k: (k, j)),       # weight
                pl.BlockSpec((1, TE), lambda i, j, k: (0, j)),        # bias
            ],
            out_specs=pl.BlockSpec((TM, TE), lambda i, j, k: (i, j)),
            scratch_shapes=[pltpu.VMEM((TM, TE), jnp.float32)],
        ),
        compiler_params=pltpu.CompilerParams(
            dimension_semantics=("parallel", "parallel", "arbitrary"),
            vmem_limit_bytes=vmem_limit,
        ),
    )(a_mat, patches, w_mat, b_mat)

    # --- glue: drop padding, back to (N, E, Dp, Hp, Wp) like PyTorch Conv3d ---
    out = out[:M, :E]
    out = out.reshape(N, Dp, Hp, Wp, E)
    out = jnp.transpose(out, (0, 4, 1, 2, 3))
    return out


def _reference(x, weight, bias, prelu_a, patch_size):
    # Pure-JAX f32 reference (lax conv) to validate the kernel.
    y = jax.lax.conv_general_dilated(
        x, weight,
        window_strides=(patch_size,) * 3,
        padding="VALID",
        dimension_numbers=("NCDHW", "OIDHW", "NCDHW"),
    )
    y = y + bias.reshape(1, -1, 1, 1, 1)
    return jnp.where(y > 0, y, prelu_a * y)


if __name__ == "__main__":
    # Small shapes consistent with the module: Conv3d -> 5D input NCDHW.
    patch_size = 4
    in_channels = 4
    embed_dim = 32
    N, D, H, W = 2, 8, 8, 8   # -> 2x2x2 = 8 patches per sample

    key = jax.random.PRNGKey(0)
    kx, kw, kb = jax.random.split(key, 3)
    x = jax.random.normal(kx, (N, in_channels, D, H, W), dtype=jnp.float32)
    weight = 0.05 * jax.random.normal(
        kw, (embed_dim, in_channels, patch_size, patch_size, patch_size),
        dtype=jnp.float32)
    bias = 0.01 * jax.random.normal(kb, (embed_dim,), dtype=jnp.float32)
    prelu_a = jnp.float32(0.25)   # PyTorch nn.PReLU default init

    out = vit_embedder_pallas(x, weight, bias, prelu_a, patch_size)
    out = jax.block_until_ready(out)

    ref = _reference(x, weight, bias, prelu_a, patch_size)
    assert out.shape == (N, embed_dim, D // patch_size, H // patch_size, W // patch_size)
    # bf16 matmul inputs with f32 accumulation: relaxed tolerance vs f32 reference.
    assert jnp.allclose(out, ref, atol=5e-2, rtol=5e-2), \
        float(jnp.max(jnp.abs(out - ref)))

    print("KERNEL_OK")
</pallas_src>

<mosaic_0001>
module attributes {stable_mosaic.version = 11 : i64} {
  func.func @_embed_kernel(%arg0: i32, %arg1: i32, %arg2: i32, %arg3: memref<1x1xf32, #tpu.memory_space<smem>>, %arg4: memref<16x256xbf16, #tpu.memory_space<vmem>>, %arg5: memref<256x128xbf16, #tpu.memory_space<vmem>>, %arg6: memref<1x128xf32, #tpu.memory_space<vmem>>, %arg7: memref<16x128xf32, #tpu.memory_space<vmem>>, %arg8: memref<16x128xf32, #tpu.memory_space<vmem>>) attributes {dimension_semantics = [#tpu.dimension_semantics<parallel>, #tpu.dimension_semantics<parallel>, #tpu.dimension_semantics<arbitrary>], iteration_bounds = array<i64: 1, 1, 1>, scalar_prefetch = 0 : i64, scratch_operands = 1 : i64, tpu.core_type = #tpu.core_type<tc>, window_params = [{transform_indices = @transform_0, window_bounds = array<i64: 1, 1>}, {transform_indices = @transform_1, window_bounds = array<i64: 16, 256>}, {transform_indices = @transform_2, window_bounds = array<i64: 256, 128>}, {transform_indices = @transform_3, window_bounds = array<i64: 1, 128>}, {transform_indices = @transform_4, window_bounds = array<i64: 16, 128>}]} {
    %c0_i32 = arith.constant 0 : i32
    %0 = arith.cmpi eq, %arg2, %c0_i32 : i32
    %1 = arith.extui %0 : i1 to i32
    %c0_i32_0 = arith.constant 0 : i32
    %2 = arith.cmpi ne, %1, %c0_i32_0 : i32
    scf.if %2 {
      %cst_10 = arith.constant 0.000000e+00 : f32
      %12 = vector.broadcast %cst_10 : f32 to vector<16x128xf32>
      %c0_11 = arith.constant 0 : index
      %c0_12 = arith.constant 0 : index
      %13 = vector.load %arg8[%c0_11, %c0_12] : memref<16x128xf32, #tpu.memory_space<vmem>>, vector<16x128xf32>
      tpu.vector_store %arg8[%c0_11, %c0_12], %12 {strides = array<i32>} : memref<16x128xf32, #tpu.memory_space<vmem>>, vector<16x128xf32>,
    } else {
    }
    %c0 = arith.constant 0 : index
    %c0_1 = arith.constant 0 : index
    %3 = vector.load %arg8[%c0, %c0_1] : memref<16x128xf32, #tpu.memory_space<vmem>>, vector<16x128xf32>
    %c0_2 = arith.constant 0 : index
    %c0_3 = arith.constant 0 : index
    %4 = vector.load %arg4[%c0_2, %c0_3] : memref<16x256xbf16, #tpu.memory_space<vmem>>, vector<16x256xbf16>
    %c0_4 = arith.constant 0 : index
    %c0_5 = arith.constant 0 : index
    %5 = vector.load %arg5[%c0_4, %c0_5] : memref<256x128xbf16, #tpu.memory_space<vmem>>, vector<256x128xbf16>
    %cst = arith.constant dense<0.000000e+00> : vector<16x128xf32>
    %6 = tpu.matmul %4, %5, %cst {dimension_numbers = #tpu.dot_dimension_numbers<[1], [0], [0], [1], [0, 0, 1, 1], [], []>} : vector<16x256xbf16>, vector<256x128xbf16>, vector<16x128xf32> -> vector<16x128xf32>
    %7 = arith.addf %3, %6 : vector<16x128xf32>
    %c0_6 = arith.constant 0 : index
    %c0_7 = arith.constant 0 : index
    %8 = vector.load %arg8[%c0_6, %c0_7] : memref<16x128xf32, #tpu.memory_space<vmem>>, vector<16x128xf32>
    tpu.vector_store %arg8[%c0_6, %c0_7], %7 {strides = array<i32>} : memref<16x128xf32, #tpu.memory_space<vmem>>, vector<16x128xf32>,
    %c0_i32_8 = arith.constant 0 : i32
    %9 = arith.cmpi eq, %arg2, %c0_i32_8 : i32
    %10 = arith.extui %9 : i1 to i32
    %c0_i32_9 = arith.constant 0 : i32
    %11 = arith.cmpi ne, %10, %c0_i32_9 : i32
    scf.if %11 {
      %c0_10 = arith.constant 0 : index
      %c0_11 = arith.constant 0 : index
      %12 = memref.load %arg3[%c0_10, %c0_11] : memref<1x1xf32, #tpu.memory_space<smem>>
      %c0_12 = arith.constant 0 : index
      %c0_13 = arith.constant 0 : index
      %13 = vector.load %arg8[%c0_12, %c0_13] : memref<16x128xf32, #tpu.memory_space<vmem>>, vector<16x128xf32>
      %c0_14 = arith.constant 0 : index
      %c0_15 = arith.constant 0 : index
      %14 = vector.load %arg6[%c0_14, %c0_15] : memref<1x128xf32, #tpu.memory_space<vmem>>, vector<1x128xf32>
      %15 = vector.broadcast %14 : vector<1x128xf32> to vector<16x128xf32>
      %16 = arith.addf %13, %15 : vector<16x128xf32>
      %cst_16 = arith.constant 0.000000e+00 : f32
      %17 = vector.broadcast %cst_16 : f32 to vector<16x128xf32>
      %18 = arith.cmpf ogt, %16, %17 : vector<16x128xf32>
      %19 = vector.broadcast %12 : f32 to vector<16x128xf32>
      %20 = arith.mulf %19, %16 : vector<16x128xf32>
      %21 = arith.select %18, %16, %20 : vector<16x128xi1>, vector<16x128xf32>
      %c0_17 = arith.constant 0 : index
      %c0_18 = arith.constant 0 : index
      %22 = vector.load %arg7[%c0_17, %c0_18] : memref<16x128xf32, #tpu.memory_space<vmem>>, vector<16x128xf32>
      tpu.vector_store %arg7[%c0_17, %c0_18], %21 {strides = array<i32>} : memref<16x128xf32, #tpu.memory_space<vmem>>, vector<16x128xf32>,
    } else {
    }
    return
  }
  func.func @transform_0(%arg0: i32, %arg1: i32, %arg2: i32) -> (i32, i32) {
    %c0_i32 = arith.constant 0 : i32
    %c0_i32_0 = arith.constant 0 : i32
    %c0_i32_1 = arith.constant 0 : i32
    return %c0_i32, %c0_i32_0 : i32, i32
  }
  func.func @transform_1(%arg0: i32, %arg1: i32, %arg2: i32) -> (i32, i32) {
    %c0_i32 = arith.constant 0 : i32
    return %arg0, %arg2 : i32, i32
  }
  func.func @transform_2(%arg0: i32, %arg1: i32, %arg2: i32) -> (i32, i32) {
    %c0_i32 = arith.constant 0 : i32
    return %arg2, %arg1 : i32, i32
  }
  func.func @transform_3(%arg0: i32, %arg1: i32, %arg2: i32) -> (i32, i32) {
    %c0_i32 = arith.constant 0 : i32
    %c0_i32_0 = arith.constant 0 : i32
    return %c0_i32, %arg1 : i32, i32
  }
  func.func @transform_4(%arg0: i32, %arg1: i32, %arg2: i32) -> (i32, i32) {
    %c0_i32 = arith.constant 0 : i32
    return %arg0, %arg1 : i32, i32
  }
}

</mosaic_0001>

<llo_original>
// kernel: tpu_custom_call.1
$region0: #{tpu_custom_call.1}
  #allocation0 [shape = 'u32[]', space=smem, size = 0x4, offset = 0x4, fixed_abs, tag = 'smem constant byte address 0x4 - core index']
  #allocation1 [shape = 'u32[72,128]{1,0:T(1,128)}', space=vmem, size = 0x9000, scoped, tag = 'internal scratch']
  #allocation2 [shape = 'f32[16,128]{1,0:T(8,128)}', space=vmem, size = 0x2000, scoped, tag = 'scratch operand']
  #allocation3 [shape = 'f32[1,1]{1,0:T(1,128)S(6)}', space=smem, size = 0x200, scoped, tag = 'scoped memory for tpu_custom_call.1']
  %s0 = inlined_call_operand.<no memory space> [shape: f32[1,1], index: 0, kind: input, shape index: {}]
  %s1 = inlined_call_operand.hbm [shape: bf16[16,256], index: 1, kind: input, shape index: {}]
  %s2 = inlined_call_operand.hbm [shape: bf16[256,128], index: 2, kind: input, shape index: {}]
  %s3 = inlined_call_operand.vmem [shape: f32[1,128], index: 3, kind: input, shape index: {}]
  %s4 = inlined_call_operand.hbm [shape: f32[16,128], index: 4, kind: output, shape index: {}]
  %s5 = sld [smem:[#allocation0]]
  $region42: #{tpu_custom_call.1} parent=0
    _
  %s7 = ssub.s32 1, %s5
  %s8 = scalar_select 0, %s7, %s5
  %9 = sst [smem:[#allocation3]] %s0
  $region1: #{tpu_custom_call.1} parent=0
    #allocation4 [shape = 'u8[8192]{0}', space=vmem, size = 0x2000, scoped, tag = 'input window, operand 1, single buffered']
    #allocation5 [shape = 's32[1]{0}', space=sflag, size = 0x4, scoped, tag = 'scoped memory for tpu_custom_call.1']
    #allocation6 [shape = 's32[1]{0}', space=sflag, size = 0x4, scoped, tag = 'scoped memory for tpu_custom_call.1']
    #allocation7 [shape = 'u8[65536]{0}', space=vmem, size = 0x10000, scoped, tag = 'input window, operand 2, single buffered']
    #allocation8 [shape = 's32[1]{0}', space=sflag, size = 0x4, scoped, tag = 'scoped memory for tpu_custom_call.1']
    #allocation9 [shape = 'u8[8192]{0}', space=vmem, size = 0x2000, scoped, tag = 'output window, operand 0, single buffered']
    %10 = vsyncpa [#allocation5], 0
    %11 = vsyncpa [#allocation8], 0
    %12 = vsyncpa [#allocation6], 0
    // Predicated region
    $region2: #{tpu_custom_call.1} parent=1 // pred_check
      _
    $region3: #{tpu_custom_call.1} parent=1 // pred_check_branch
      %14 = sbr.rel (0) target = $region5
    $region4: #{tpu_custom_call.1} parent=1 // pred_region
      _
    $region5: #{tpu_custom_call.1} parent=1 // pred_fallthru
      _
    // Predicated region
    $region6: #{tpu_custom_call.1} parent=1 // pred_check
      _
    $region7: #{tpu_custom_call.1} parent=1 // pred_check_branch
      %16 = sbr.rel (0) target = $region9
    $region8: #{tpu_custom_call.1} parent=1 // pred_region
      %18 = vsyncadd [#allocation5], 0
      %s19 = sshll.u32 %s1, 4
      %s20 = int_to_ptr.hbm [resolvable:$true] %s19
      %s21 = sshll.u32 [#allocation4], 4
      %s22 = int_to_ptr.vmem [resolvable:$true] %s21
      %27 = dma.hbm_to_vmem [thread:$0]  %s20, 256, %s22, [#allocation5], 128, 128, 8
    $region9: #{tpu_custom_call.1} parent=1 // pred_fallthru
      _
    // Predicated region
    $region10: #{tpu_custom_call.1} parent=1 // pred_check
      _
    $region11: #{tpu_custom_call.1} parent=1 // pred_check_branch
      %29 = sbr.rel (0) target = $region13
    $region12: #{tpu_custom_call.1} parent=1 // pred_region
      %31 = vsyncadd [#allocation8], 0
      %s32 = sshll.u32 %s2, 4
      %s33 = int_to_ptr.hbm [resolvable:$true] %s32
      %s34 = sshll.u32 [#allocation7], 4
      %s35 = int_to_ptr.vmem [resolvable:$true] %s34
      %40 = dma.hbm_to_vmem [thread:$0]  %s33, 2048, %s35, [#allocation8], 64, 64, 4
    $region13: #{tpu_custom_call.1} parent=1 // pred_fallthru
      _
    // Predicated region
    $region14: #{tpu_custom_call.1} parent=1 // pred_check
      _
    $region15: #{tpu_custom_call.1} parent=1 // pred_check_branch
      %42 = sbr.rel (0) target = $region17
    $region16: #{tpu_custom_call.1} parent=1 // pred_region
      _
    $region17: #{tpu_custom_call.1} parent=1 // pred_fallthru
      _
    // Predicated region
    $region18: #{tpu_custom_call.1} parent=1 // pred_check
      _
    $region19: #{tpu_custom_call.1} parent=1 // pred_check_branch
      %44 = sbr.rel (0) target = $region21
    $region20: #{tpu_custom_call.1} parent=1 // pred_region
      %46 = dma.done [#allocation5], 256
    $region21: #{tpu_custom_call.1} parent=1 // pred_fallthru
      _
    // Predicated region
    $region22: #{tpu_custom_call.1} parent=1 // pred_check
      _
    $region23: #{tpu_custom_call.1} parent=1 // pred_check_branch
      %48 = sbr.rel (0) target = $region25
    $region24: #{tpu_custom_call.1} parent=1 // pred_region
      %50 = dma.done [#allocation8], 2048
    $region25: #{tpu_custom_call.1} parent=1 // pred_fallthru
      _
    %p51 = scmp.eq.s32.totalorder 0, 0
    // Predicated region
    $region26: #{tpu_custom_call.1} parent=1 // pred_check
      %p52 = pneg %p51
    $region27: #{tpu_custom_call.1} parent=1 // pred_check_branch
      %54 = sbr.rel (%p52) target = $region29
    $region28: #{tpu_custom_call.1} parent=1 // pred_region
      %55 = vst [vmem:[#allocation2] sm:$0xff] 0.0
      %56 = vst [vmem:[#allocation2 + $0x8] sm:$0xff] 0.0
    $region29: #{tpu_custom_call.1} parent=1 // pred_fallthru
      _
    %v57 = vld [vmem:[#allocation2] sm:$0xff]
    %v58 = vld [vmem:[#allocation2 + $0x8] sm:$0xff]
    %v59 = vld [vmem:[#allocation4] sm:$0xff]
    %v60 = vld [vmem:[#allocation4 + $0x8] sm:$0xff]
    %v61 = vld [vmem:[#allocation7] sm:$0xf]
    %v62 = vld [vmem:[#allocation7 + $0x4] sm:$0xf]
    %v63 = vld [vmem:[#allocation7 + $0x8] sm:$0xf]
    %v64 = vld [vmem:[#allocation7 + $0xc] sm:$0xf]
    %v65 = vld [vmem:[#allocation7 + $0x10] sm:$0xf]
    %v66 = vld [vmem:[#allocation7 + $0x14] sm:$0xf]
    %v67 = vld [vmem:[#allocation7 + $0x18] sm:$0xf]
    %v68 = vld [vmem:[#allocation7 + $0x1c] sm:$0xf]
    %v69 = vld [vmem:[#allocation7 + $0x20] sm:$0xf]
    %v70 = vld [vmem:[#allocation7 + $0x24] sm:$0xf]
    %v71 = vld [vmem:[#allocation7 + $0x28] sm:$0xf]
    %v72 = vld [vmem:[#allocation7 + $0x2c] sm:$0xf]
    %v73 = vld [vmem:[#allocation7 + $0x30] sm:$0xf]
    %v74 = vld [vmem:[#allocation7 + $0x34] sm:$0xf]
    %v75 = vld [vmem:[#allocation7 + $0x38] sm:$0xf]
    %v76 = vld [vmem:[#allocation7 + $0x3c] sm:$0xf]
    %v77 = vld [vmem:[#allocation7 + $0x40] sm:$0xf]
    %v78 = vld [vmem:[#allocation7 + $0x44] sm:$0xf]
    %v79 = vld [vmem:[#allocation7 + $0x48] sm:$0xf]
    %v80 = vld [vmem:[#allocation7 + $0x4c] sm:$0xf]
    %v81 = vld [vmem:[#allocation7 + $0x50] sm:$0xf]
    %v82 = vld [vmem:[#allocation7 + $0x54] sm:$0xf]
    %v83 = vld [vmem:[#allocation7 + $0x58] sm:$0xf]
    %v84 = vld [vmem:[#allocation7 + $0x5c] sm:$0xf]
    %v85 = vld [vmem:[#allocation7 + $0x60] sm:$0xf]
    %v86 = vld [vmem:[#allocation7 + $0x64] sm:$0xf]
    %v87 = vld [vmem:[#allocation7 + $0x68] sm:$0xf]
    %v88 = vld [vmem:[#allocation7 + $0x6c] sm:$0xf]
    %v89 = vld [vmem:[#allocation7 + $0x70] sm:$0xf]
    %v90 = vld [vmem:[#allocation7 + $0x74] sm:$0xf]
    %v91 = vld [vmem:[#allocation7 + $0x78] sm:$0xf]
    %v92 = vld [vmem:[#allocation7 + $0x7c] sm:$0xf]
    %v95 = vunpack.c.l.b16 %v59
    %v96 = vunpack.c.h.b16 %v59
    %v97 = vunpack.c.l.b16 %v60
    %v98 = vunpack.c.h.b16 %v60
    %v99 = vpack.c.b16 %v97, %v95
    %v100 = vpack.c.b16 %v98, %v96
    %v135 = vunpack.c.l.b16 %v61
    %v136 = vunpack.c.l.b16 %v62
    %v137 = vunpack.c.l.b16 %v63
    %v138 = vunpack.c.l.b16 %v64
    %v139 = vunpack.c.l.b16 %v65
    %v140 = vunpack.c.l.b16 %v66
    %v141 = vunpack.c.l.b16 %v67
    %v142 = vunpack.c.l.b16 %v68
    %v143 = vunpack.c.l.b16 %v69
    %v144 = vunpack.c.l.b16 %v70
    %v145 = vunpack.c.l.b16 %v71
    %v146 = vunpack.c.l.b16 %v72
    %v147 = vunpack.c.l.b16 %v73
    %v148 = vunpack.c.l.b16 %v74
    %v149 = vunpack.c.l.b16 %v75
    %v150 = vunpack.c.l.b16 %v76
    %v151 = vunpack.c.l.b16 %v77
    %v152 = vunpack.c.l.b16 %v78
    %v153 = vunpack.c.l.b16 %v79
    %v154 = vunpack.c.l.b16 %v80
    %v155 = vunpack.c.l.b16 %v81
    %v156 = vunpack.c.l.b16 %v82
    %v157 = vunpack.c.l.b16 %v83
    %v158 = vunpack.c.l.b16 %v84
    %v159 = vunpack.c.l.b16 %v85
    %v160 = vunpack.c.l.b16 %v86
    %v161 = vunpack.c.l.b16 %v87
    %v162 = vunpack.c.l.b16 %v88
    %v163 = vunpack.c.l.b16 %v89
    %v164 = vunpack.c.l.b16 %v90
    %v165 = vunpack.c.l.b16 %v91
    %v166 = vunpack.c.l.b16 %v92
    %v167 = vpack.c.b16 %v136, %v135
    %v168 = vpack.c.b16 %v138, %v137
    %v169 = vpack.c.b16 %v140, %v139
    %v170 = vpack.c.b16 %v142, %v141
    %v171 = vpack.c.b16 %v144, %v143
    %v172 = vpack.c.b16 %v146, %v145
    %v173 = vpack.c.b16 %v148, %v147
    %v174 = vpack.c.b16 %v150, %v149
    %v175 = vpack.c.b16 %v152, %v151
    %v176 = vpack.c.b16 %v154, %v153
    %v177 = vpack.c.b16 %v156, %v155
    %v178 = vpack.c.b16 %v158, %v157
    %v179 = vpack.c.b16 %v160, %v159
    %v180 = vpack.c.b16 %v162, %v161
    %v181 = vpack.c.b16 %v164, %v163
    %v182 = vpack.c.b16 %v166, %v165
    %199 = vmatpush.bf16.msra.mxu0 %v174
    %200 = vmatpush.bf16.msra.mxu0 %v173
    %201 = vmatpush.bf16.msra.mxu0 %v172
    %202 = vmatpush.bf16.msra.mxu0 %v171
    %203 = vmatpush.bf16.msra.mxu0 %v170
    %204 = vmatpush.bf16.msra.mxu0 %v169
    %205 = vmatpush.bf16.msra.mxu0 %v168
    %206 = vmatpush.bf16.msra.mxu0 %v167
    %207 = vmatmul.bf16.gmra.mxu0 %v99
    %v208 = vpop.f32.mrf.mxu0
    %v209 = vadd.f32 0.0, %v208
    %v210 = vpop.f32.mrf.mxu0
    %v211 = vadd.f32 0.0, %v210
    %212 = vdwg.mxu0
    %213 = vmatpush.bf16.msra.mxu0 %v182
    %214 = vmatpush.bf16.msra.mxu0 %v181
    %215 = vmatpush.bf16.msra.mxu0 %v180
    %216 = vmatpush.bf16.msra.mxu0 %v179
    %217 = vmatpush.bf16.msra.mxu0 %v178
    %218 = vmatpush.bf16.msra.mxu0 %v177
    %219 = vmatpush.bf16.msra.mxu0 %v176
    %220 = vmatpush.bf16.msra.mxu0 %v175
    %221 = vmatmul.bf16.gmra.mxu0 %v100
    %v222 = vpop.f32.mrf.mxu0
    %v223 = vadd.f32 %v209, %v222
    %v224 = vpop.f32.mrf.mxu0
    %v225 = vadd.f32 %v211, %v224
    %226 = vdwg.mxu0
    %v227 = vadd.f32 %v57, %v223
    %v228 = vadd.f32 %v58, %v225
    %229 = vst [vmem:[#allocation2] sm:$0xff] %v227
    %230 = vst [vmem:[#allocation2 + $0x8] sm:$0xff] %v228
    // Predicated region
    $region30: #{tpu_custom_call.1} parent=1 // pred_check
      %p231 = pneg %p51
    $region31: #{tpu_custom_call.1} parent=1 // pred_check_branch
      %233 = sbr.rel (%p231) target = $region33
    $region32: #{tpu_custom_call.1} parent=1 // pred_region
      %s234 = sld [smem:[#allocation3]]
      %v235 = vld [vmem:[#allocation2] sm:$0xff]
      %v236 = vld [vmem:[#allocation2 + $0x8] sm:$0xff]
      %v237 = vld [vmem:[%s3] sm:$0x1]
      %v239 = vperm.slane %v237, 0
      %v241 = vadd.f32 %v235, %v239
      %v242 = vadd.f32 %v236, %v239
      %vm243 = vcmp.gt.f32.partialorder %v241, 0.0
      %vm244 = vcmp.gt.f32.partialorder %v242, 0.0
      %v245 = vstv %s234
      %v246 = vmul.f32 %v245, %v241
      %v247 = vmul.f32 %v245, %v242
      %v248 = vsel %vm243, %v241, %v246
      %v249 = vsel %vm244, %v242, %v247
      %250 = vst [vmem:[#allocation9] sm:$0xff] %v248
      %251 = vst [vmem:[#allocation9 + $0x8] sm:$0xff] %v249
    $region33: #{tpu_custom_call.1} parent=1 // pred_fallthru
      _
    // Predicated region
    $region34: #{tpu_custom_call.1} parent=1 // pred_check
      _
    $region35: #{tpu_custom_call.1} parent=1 // pred_check_branch
      %253 = sbr.rel (0) target = $region37
    $region36: #{tpu_custom_call.1} parent=1 // pred_region
      %255 = vsyncadd [#allocation6], 0
      %s256 = sshll.u32 [#allocation9], 4
      %s257 = int_to_ptr.vmem [resolvable:$true] %s256
      %s258 = sshll.u32 %s4, 4
      %s259 = int_to_ptr.hbm [resolvable:$true] %s258
      %264 = dma.vmem_to_hbm [thread:$0]  %s257, 256, %s259, [#allocation6], 128, 128, 8
    $region37: #{tpu_custom_call.1} parent=1 // pred_fallthru
      _
    // Predicated region
    $region38: #{tpu_custom_call.1} parent=1 // pred_check
      _
    $region39: #{tpu_custom_call.1} parent=1 // pred_check_branch
      %266 = sbr.rel (0) target = $region41
    $region40: #{tpu_custom_call.1} parent=1 // pred_region
      %268 = dma.done [#allocation6], 256
    $region41: #{tpu_custom_call.1} parent=1 // pred_fallthru
      _
    %269 = vsyncpa [#allocation5], 1
    %270 = vsyncpa [#allocation8], 1
    %271 = vsyncpa [#allocation6], 1

</llo_original>
